<compile_context>
chip_gen: v7x
topology: tpu7x:2x2x1
jax: 0.10.0
libtpu: 0.0.40
codegen_flags: <defaults>
</compile_context>

<pallas_src>
import math
import jax
import jax.numpy as jnp
from jax.experimental import pallas as pl
from jax.experimental.pallas import tpu as pltpu


def _round_up(x, m):
    return (x + m - 1) // m * m


# VMEM policy (v5e/v6e: 128 MiB physical, v7x: 64 MiB per TensorCore).
_VMEM_LIMIT_BYTES = 48 * 1024 * 1024     # scoped limit handed to Mosaic
_VMEM_BUDGET_BYTES = 40 * 1024 * 1024    # our own double-buffered estimate cap
_RESIDENT_W_BYTES = 12 * 1024 * 1024     # keep W resident in VMEM up to this size
_SMALL_PROBLEM_MACS = 1 << 20            # below this, plain XLA dot beats launch cost


def _choose_m_tile(M, sublane, max_tile=512):
    """Pick an M tile (multiple of `sublane`) bounding padding waste to ~12% and
    preferring >= 2 M-tiles so both v7x TensorCores get work."""
    M = max(M, 1)
    Mp = _round_up(M, sublane)
    cap = min(max_tile, Mp)
    if Mp >= 2 * sublane:  # enough rows for two tiles
        cap = min(cap, _round_up((Mp + 1) // 2, sublane))
    cap = max(cap, sublane)
    allowed = max(sublane, M // 8)  # <= ~12.5% overshoot
    tm = sublane
    t = cap
    while t >= sublane:
        if _round_up(Mp, t) - M <= allowed:
            tm = t
            break
        t -= sublane
    return tm, _round_up(Mp, tm)


def _choose_div_tile(P, max_tile=512):
    """Largest multiple of 128 that divides P (P itself a multiple of 128)."""
    t = min(max_tile, P)
    t -= t % 128
    while t > 128 and P % t != 0:
        t -= 128
    return max(t, 128)


# ---------------------------------------------------------------------------
# Kernels
# ---------------------------------------------------------------------------

def _linear_resident_kernel(x_ref, w_ref, b_ref, o_ref):
    """1-D grid over M. W/bias blocks are the full (resident) arrays."""
    acc = jnp.dot(x_ref[...], w_ref[...], preferred_element_type=jnp.float32)
    o_ref[...] = (acc + b_ref[...]).astype(o_ref.dtype)


def _linear_tiled_kernel_f32(x_ref, w_ref, b_ref, o_ref):
    """3-D (M,N,K) grid, f32 output: accumulate directly into o_ref (no scratch)."""
    @pl.when(pl.program_id(2) == 0)
    def _():
        o_ref[...] = jnp.broadcast_to(b_ref[...].astype(jnp.float32), o_ref.shape)

    o_ref[...] += jnp.dot(x_ref[...], w_ref[...], preferred_element_type=jnp.float32)


def _linear_tiled_kernel_acc(x_ref, w_ref, b_ref, o_ref, acc_ref):
    """3-D (M,N,K) grid, narrow output dtype: f32 VMEM accumulator."""
    @pl.when(pl.program_id(2) == 0)
    def _():
        acc_ref[...] = jnp.zeros_like(acc_ref)

    acc_ref[...] += jnp.dot(x_ref[...], w_ref[...], preferred_element_type=jnp.float32)

    @pl.when(pl.program_id(2) == pl.num_programs(2) - 1)
    def _():
        o_ref[...] = (acc_ref[...] + b_ref[...]).astype(o_ref.dtype)


# ---------------------------------------------------------------------------
# Wrapper
# ---------------------------------------------------------------------------

def pallas_linear(x2d, w, b, *, out_dtype=None, force_pallas=False,
                  resident_w_bytes=_RESIDENT_W_BYTES):
    """y = x2d @ w + b  with f32 accumulation.

    x2d: (M, K)      any float dtype; cast to w.dtype (typically bf16) before the kernel
    w:   (K, N)      ideally N already a multiple of 128 (module pre-pads at init)
    b:   (1, N)      f32
    Returns (M, N) in `out_dtype` (default: x2d.dtype).
    """
    M, K = x2d.shape
    Kw, N = w.shape
    assert K == Kw, (K, Kw)
    assert b.shape == (1, N), b.shape
    if out_dtype is None:
        out_dtype = x2d.dtype

    # Operands in the weight's compute dtype (bf16 path: half the HBM bytes, bf16 MXU).
    x2d = x2d.astype(w.dtype)

    # Lane-dense output columns. Normally a no-op: the module pre-pads W/bias at init.
    Np = _round_up(N, 128)
    if Np != N:
        w = jnp.pad(w, ((0, 0), (0, Np - N)))
        b = jnp.pad(b, ((0, 0), (0, Np - N)))

    # Small-problem fallback: launch + per-step overhead dominates a sub-tile GEMM.
    if not force_pallas and M * K * Np < _SMALL_PROBLEM_MACS:
        y = jnp.dot(x2d, w, preferred_element_type=jnp.float32) + b
        return y[:, :N].astype(out_dtype)

    sublane = 16 if x2d.dtype.itemsize < 4 else 8
    x_item = x2d.dtype.itemsize
    w_item = w.dtype.itemsize
    b_item = b.dtype.itemsize
    o_item = jnp.dtype(out_dtype).itemsize

    # ---- Path B: resident W, 1-D grid over M (roofline optimum for this GEMM) ----
    if K * Np * w_item <= resident_w_bytes:
        tm, Mp = _choose_m_tile(M, sublane)
        vmem_est = 2 * (tm * K * x_item + K * Np * w_item + Np * b_item + tm * Np * o_item)
        if vmem_est <= _VMEM_BUDGET_BYTES:
            if Mp != M:
                x2d = jnp.pad(x2d, ((0, Mp - M), (0, 0)))
            y = pl.pallas_call(
                _linear_resident_kernel,
                out_shape=jax.ShapeDtypeStruct((Mp, Np), out_dtype),
                grid_spec=pltpu.PrefetchScalarGridSpec(
                    num_scalar_prefetch=0,
                    grid=(Mp // tm,),
                    in_specs=[
                        pl.BlockSpec((tm, K), lambda i: (i, 0)),
                        pl.BlockSpec((K, Np), lambda i: (0, 0)),   # resident
                        pl.BlockSpec((1, Np), lambda i: (0, 0)),   # resident
                    ],
                    out_specs=pl.BlockSpec((tm, Np), lambda i: (i, 0)),
                ),
                compiler_params=pltpu.CompilerParams(
                    dimension_semantics=("parallel",),
                    vmem_limit_bytes=_VMEM_LIMIT_BYTES,
                ),
            )(x2d, w, b)
            if Mp != M:
                y = y[:M]
            return y if N == Np else y[:, :N]

    # ---- Path C: 3-D (M, N, K) tiled grid with K-reduction (large W) ----
    tn = _choose_div_tile(Np)
    Kp = _round_up(K, 128)
    tk = _choose_div_tile(Kp)
    tm, Mp = _choose_m_tile(M, sublane)
    if (Mp, Kp) != (M, K):
        x2d = jnp.pad(x2d, ((0, Mp - M), (0, Kp - K)))
    if Kp != K:
        w = jnp.pad(w, ((0, Kp - K), (0, 0)))

    if jnp.dtype(out_dtype) == jnp.float32:
        kernel = _linear_tiled_kernel_f32
        scratch = []
    else:
        kernel = _linear_tiled_kernel_acc
        scratch = [pltpu.VMEM((tm, tn), jnp.float32)]

    y = pl.pallas_call(
        kernel,
        out_shape=jax.ShapeDtypeStruct((Mp, Np), out_dtype),
        grid_spec=pltpu.PrefetchScalarGridSpec(
            num_scalar_prefetch=0,
            grid=(Mp // tm, Np // tn, Kp // tk),
            in_specs=[
                pl.BlockSpec((tm, tk), lambda i, j, k: (i, k)),
                pl.BlockSpec((tk, tn), lambda i, j, k: (k, j)),
                pl.BlockSpec((1, tn), lambda i, j, k: (0, j)),
            ],
            out_specs=pl.BlockSpec((tm, tn), lambda i, j, k: (i, j)),
            scratch_shapes=scratch,
        ),
        compiler_params=pltpu.CompilerParams(
            dimension_semantics=("parallel", "parallel", "arbitrary"),
            vmem_limit_bytes=_VMEM_LIMIT_BYTES,
        ),
    )(x2d, w, b)
    if Mp != M:
        y = y[:M]
    return y if N == Np else y[:, :N]


# ---------------------------------------------------------------------------
# Module
# ---------------------------------------------------------------------------

class ReconstructionMethod1:
    """JAX/Pallas port of the PyTorch ReconstructionMethod1 module."""

    def __init__(self, decoder_dim, patch_size, image_size, output_channels, key,
                 compute_dtype=jnp.bfloat16):
        self.decoder_dim = decoder_dim
        self.patch_size = patch_size
        self.image_size = image_size
        self.out_channels = output_channels
        self.num_patches = (image_size // patch_size) ** 2
        self.out_features = patch_size * patch_size * output_channels
        self.force_pallas = False

        # nn.Linear default init: uniform(-1/sqrt(K), 1/sqrt(K)); weight kept transposed.
        k_w, k_b = jax.random.split(key)
        bound = 1.0 / math.sqrt(decoder_dim)
        self.weight_t = jax.random.uniform(
            k_w, (decoder_dim, self.out_features), jnp.float32, -bound, bound
        )
        self.bias = jax.random.uniform(
            k_b, (1, self.out_features), jnp.float32, -bound, bound
        )

        # Pad N to a lane-dense multiple of 128 ONCE and store the weight in the
        # compute dtype (bf16) so no per-call pad/cast copy of W is needed.
        n_pad = _round_up(self.out_features, 128)
        self.weight_t_padded = jnp.pad(
            self.weight_t, ((0, 0), (0, n_pad - self.out_features))
        ).astype(compute_dtype)
        self.bias_padded = jnp.pad(
            self.bias, ((0, 0), (0, n_pad - self.out_features))
        )  # bias stays f32 (added on the f32 accumulator at finalize)

    def __call__(self, x):
        # x: (B, num_patches, decoder_dim)
        batch_size, num_patches, _ = x.shape
        assert num_patches == self.num_patches, (
            f"Expected {self.num_patches} patches but got {num_patches}"
        )
        p = self.patch_size
        c = self.out_channels
        h = w = int(self.num_patches ** 0.5)

        # Hot path: Linear as a Pallas matmul kernel (bf16 operands, f32 accumulate).
        x2d = x.reshape(batch_size * num_patches, self.decoder_dim)
        y2d = pallas_linear(
            x2d, self.weight_t_padded, self.bias_padded,
            out_dtype=x.dtype, force_pallas=self.force_pallas,
        )
        y2d = y2d[:, : self.out_features]

        # rearrange 'b (h w) (p1 p2 c) -> b c (h p1) (w p2)'  (layout glue, fuses in XLA)
        y = y2d.reshape(batch_size, h, w, p, p, c)   # b, h, w, p1, p2, c
        y = jnp.transpose(y, (0, 5, 1, 3, 2, 4))     # b, c, h, p1, w, p2
        y = y.reshape(batch_size, c, h * p, w * p)   # b, c, H, W  (NCHW)
        return y


# ---------------------------------------------------------------------------
# Demo / correctness checks
# ---------------------------------------------------------------------------

if __name__ == "__main__":
    # Small shapes consistent with the module.
    batch = 2
    decoder_dim = 32
    patch_size = 4
    image_size = 16
    out_channels = 4
    num_patches = (image_size // patch_size) ** 2  # 16

    key = jax.random.PRNGKey(0)
    k_param, k_x = jax.random.split(key)

    module = ReconstructionMethod1(
        decoder_dim, patch_size, image_size, out_channels, k_param
    )
    # Force the Pallas path even at this tiny size so the kernel is exercised
    # (the auto heuristic would use plain jnp.dot here).
    module.force_pallas = True

    x = jax.random.normal(k_x, (batch, num_patches, decoder_dim), jnp.float32)
    out = jax.block_until_ready(module(x))
    assert out.shape == (batch, out_channels, image_size, image_size), out.shape

    # Reference with the same bf16 input cast (f32 accumulation) -> near-exact match.
    x2d = x.reshape(-1, decoder_dim)
    xb = x2d.astype(jnp.bfloat16).astype(jnp.float32)
    wb = module.weight_t_padded.astype(jnp.float32)[:, : module.out_features]
    y_ref2d = xb @ wb + module.bias
    h = w = image_size // patch_size
    y_ref = y_ref2d.reshape(batch, h, w, patch_size, patch_size, out_channels)
    y_ref = jnp.transpose(y_ref, (0, 5, 1, 3, 2, 4)).reshape(
        batch, out_channels, image_size, image_size
    )
    assert jnp.allclose(out, y_ref, atol=1e-4, rtol=1e-4)

    # PyTorch-semantics f32 reference with relaxed tolerance (bf16 operands).
    y_f32_2d = x2d @ module.weight_t + module.bias
    y_f32 = y_f32_2d.reshape(batch, h, w, patch_size, patch_size, out_channels)
    y_f32 = jnp.transpose(y_f32, (0, 5, 1, 3, 2, 4)).reshape(
        batch, out_channels, image_size, image_size
    )
    assert jnp.allclose(out, y_f32, atol=5e-2, rtol=5e-2)

    # Exercise the 3-D tiled fallback path (W forced out of VMEM residency).
    y_tiled = pallas_linear(
        x2d, module.weight_t_padded, module.bias_padded,
        force_pallas=True, resident_w_bytes=0,
    )
    assert jnp.allclose(
        y_tiled[:, : module.out_features], y_ref2d, atol=1e-4, rtol=1e-4
    )

    # Slightly larger case that naturally takes the resident-W Pallas path with
    # multiple M tiles (decoder_dim=256, 8x8 patches on a 64x64 image, 3 channels).
    mod2 = ReconstructionMethod1(256, 8, 64, 3, jax.random.PRNGKey(1))
    x2 = jax.random.normal(jax.random.PRNGKey(2), (4, mod2.num_patches, 256), jnp.float32)
    out2 = jax.block_until_ready(mod2(x2))
    assert out2.shape == (4, 3, 64, 64), out2.shape
    xb2 = x2.reshape(-1, 256).astype(jnp.bfloat16).astype(jnp.float32)
    wb2 = mod2.weight_t_padded.astype(jnp.float32)[:, : mod2.out_features]
    ref2 = xb2 @ wb2 + mod2.bias
    ref2 = ref2.reshape(4, 8, 8, 8, 8, 3)
    ref2 = jnp.transpose(ref2, (0, 5, 1, 3, 2, 4)).reshape(4, 3, 64, 64)
    assert jnp.allclose(out2, ref2, atol=1e-3, rtol=1e-3)

    print("KERNEL_OK")
</pallas_src>

<mosaic_0001>
module attributes {stable_mosaic.version = 11 : i64} {
  func.func @_linear_resident_kernel(%arg0: i32, %arg1: memref<16x32xbf16, #tpu.memory_space<vmem>>, %arg2: memref<32x128xbf16, #tpu.memory_space<vmem>>, %arg3: memref<1x128xf32, #tpu.memory_space<vmem>>, %arg4: memref<16x128xf32, #tpu.memory_space<vmem>>) attributes {dimension_semantics = [#tpu.dimension_semantics<parallel>], iteration_bounds = array<i64: 2>, scalar_prefetch = 0 : i64, scratch_operands = 0 : i64, tpu.core_type = #tpu.core_type<tc>, window_params = [{transform_indices = @transform_0, window_bounds = array<i64: 16, 32>}, {pipeline_mode = #tpu.pipeline_mode<synchronous>, transform_indices = @transform_1, window_bounds = array<i64: 32, 128>}, {pipeline_mode = #tpu.pipeline_mode<synchronous>, transform_indices = @transform_2, window_bounds = array<i64: 1, 128>}, {transform_indices = @transform_3, window_bounds = array<i64: 16, 128>}]} {
    %c0 = arith.constant 0 : index
    %c0_0 = arith.constant 0 : index
    %0 = vector.load %arg1[%c0, %c0_0] : memref<16x32xbf16, #tpu.memory_space<vmem>>, vector<16x32xbf16>
    %c0_1 = arith.constant 0 : index
    %c0_2 = arith.constant 0 : index
    %1 = vector.load %arg2[%c0_1, %c0_2] : memref<32x128xbf16, #tpu.memory_space<vmem>>, vector<32x128xbf16>
    %cst = arith.constant dense<0.000000e+00> : vector<16x128xf32>
    %2 = tpu.matmul %0, %1, %cst {dimension_numbers = #tpu.dot_dimension_numbers<[1], [0], [0], [1], [0, 0, 1, 1], [], []>} : vector<16x32xbf16>, vector<32x128xbf16>, vector<16x128xf32> -> vector<16x128xf32>
    %c0_3 = arith.constant 0 : index
    %c0_4 = arith.constant 0 : index
    %3 = vector.load %arg3[%c0_3, %c0_4] : memref<1x128xf32, #tpu.memory_space<vmem>>, vector<1x128xf32>
    %4 = vector.broadcast %3 : vector<1x128xf32> to vector<16x128xf32>
    %5 = arith.addf %2, %4 : vector<16x128xf32>
    %c0_5 = arith.constant 0 : index
    %c0_6 = arith.constant 0 : index
    %6 = vector.load %arg4[%c0_5, %c0_6] : memref<16x128xf32, #tpu.memory_space<vmem>>, vector<16x128xf32>
    tpu.vector_store %arg4[%c0_5, %c0_6], %5 {strides = array<i32>} : memref<16x128xf32, #tpu.memory_space<vmem>>, vector<16x128xf32>,
    return
  }
  func.func @transform_0(%arg0: i32) -> (i32, i32) {
    %c0_i32 = arith.constant 0 : i32
    %c0_i32_0 = arith.constant 0 : i32
    return %arg0, %c0_i32 : i32, i32
  }
  func.func @transform_1(%arg0: i32) -> (i32, i32) {
    %c0_i32 = arith.constant 0 : i32
    %c0_i32_0 = arith.constant 0 : i32
    %c0_i32_1 = arith.constant 0 : i32
    return %c0_i32, %c0_i32_0 : i32, i32
  }
  func.func @transform_2(%arg0: i32) -> (i32, i32) {
    %c0_i32 = arith.constant 0 : i32
    %c0_i32_0 = arith.constant 0 : i32
    %c0_i32_1 = arith.constant 0 : i32
    return %c0_i32, %c0_i32_0 : i32, i32
  }
  func.func @transform_3(%arg0: i32) -> (i32, i32) {
    %c0_i32 = arith.constant 0 : i32
    %c0_i32_0 = arith.constant 0 : i32
    return %arg0, %c0_i32 : i32, i32
  }
}

</mosaic_0001>

<llo_original>
// kernel: tpu_custom_call.1
$region0: #{tpu_custom_call.1}
  #allocation0 [shape = 'u32[]', space=smem, size = 0x4, offset = 0x4, fixed_abs, tag = 'smem constant byte address 0x4 - core index']
  #allocation1 [shape = 'u32[144,128]{1,0:T(1,128)}', space=vmem, size = 0x12000, scoped, tag = 'internal scratch']
  %s0 = inlined_call_operand.hbm [shape: bf16[32,32], index: 0, kind: input, shape index: {}]
  %s1 = inlined_call_operand.hbm [shape: bf16[32,128], index: 1, kind: input, shape index: {}]
  %s2 = inlined_call_operand.vmem [shape: f32[1,128], index: 2, kind: input, shape index: {}]
  %s3 = inlined_call_operand.hbm [shape: f32[32,128], index: 3, kind: output, shape index: {}]
  %s4 = sld [smem:[#allocation0]]
  $region53: #{tpu_custom_call.1} parent=0
    _
  %s6 = ssub.s32 1, %s4
  %s7 = scalar_select 0, %s6, %s4
  $region1: #{tpu_custom_call.1} parent=0
    #allocation2 [shape = 'u8[8192]{0}', space=vmem, size = 0x2000, scoped, tag = 'input window, operand 0']
    #allocation3 [shape = 's32[2]{0}', space=sflag, size = 0x8, scoped, tag = 'scoped memory for tpu_custom_call.1']
    #allocation4 [shape = 's32[2]{0}', space=sflag, size = 0x8, scoped, tag = 'scoped memory for tpu_custom_call.1']
    #allocation5 [shape = 'u8[8192]{0}', space=vmem, size = 0x2000, scoped, tag = 'input window, operand 1, single buffered']
    #allocation6 [shape = 's32[1]{0}', space=sflag, size = 0x4, scoped, tag = 'scoped memory for tpu_custom_call.1']
    #allocation7 [shape = 'u8[16384]{0}', space=vmem, size = 0x4000, scoped, tag = 'output window, operand 0']
    %8 = vsyncpa [#allocation3], 0
    %s9 = scalar_lea.sflag [#allocation3], 1
    %10 = vsyncpa %s9, 0
    %11 = vsyncpa [#allocation6], 0
    %12 = vsyncpa [#allocation4], 0
    %s13 = scalar_lea.sflag [#allocation4], 1
    %14 = vsyncpa %s13, 0
    loop: start=0, step=1, limit=4
    $region2: #{tpu_custom_call.1} parent=1 // loop_pre_header
      _
    $region3: #{tpu_custom_call.1} parent=1 // loop_header
      %s16 = sphi 0, %s20
      %p17 = scmp.ge.s32.totalorder %s16, 4
      %s26 = sphi 0, %s28
      %s29 = sphi 0, %s26
      %s30 = sphi 0, %s29
      %s46 = sphi 0, %s30
      %s50 = sphi 0, %s50
      %s52 = sphi 0, %s50
      %s53 = sphi 0, %s52
      %s67 = sphi 0, %s53
      %s71 = sphi 0, %s71
      %s73 = sphi 0, %s71
      %s74 = sphi 0, %s73
      %s88 = sphi 0, %s74
      %s94 = sphi 0, %s96
      %s97 = sphi 0, %s94
      %s98 = sphi 0, %s97
      %s114 = sphi 0, %s98
    $region4: #{tpu_custom_call.1} parent=1 // loop_header_branch
      %19 = sbr.rel (%p17) target = $region8
    $region5: #{tpu_custom_call.1} parent=1 // loop_body
      %s21 = ssub.s32 %s16, 1
      %s22 = ssub.s32 %s16, 2
      %s23 = sadd.s32 %s16, 1
      %s24 = ssub.s32 %s16, %s23
      %p25 = scmp.eq.s32.totalorder %s24, 0
      %s27 = sadd.s32 %s26, 1
      %s28 = scalar_select %p25, %s26, %s27
      %p31 = pneg %p25
      %p32 = scmp.eq.s32.totalorder %s16, 1
      %p33 = por %p31, %p32
      %p34 = scmp.ne.s32.totalorder %s26, %s29
      %p35 = scmp.eq.s32.totalorder %s16, 0
      %p36 = por %p34, %p35
      %p37 = scmp.ne.s32.totalorder %s26, %s29
      %p38 = scmp.eq.s32.totalorder %s21, 1
      %p39 = por %p37, %p38
      %p40 = scmp.ne.s32.totalorder %s29, %s30
      %p41 = scmp.eq.s32.totalorder %s21, 0
      %p42 = por %p40, %p41
      %p43 = scmp.ne.s32.totalorder %s29, %s30
      %p44 = scmp.eq.s32.totalorder %s22, 1
      %p45 = por %p43, %p44
      %p47 = scmp.ne.s32.totalorder %s30, %s46
      %p48 = scmp.eq.s32.totalorder %s22, 0
      %p49 = por %p47, %p48
      %s51 = sadd.s32 %s50, 1
      %p54 = scmp.eq.s32.totalorder %s16, 1
      %p55 = scmp.ne.s32.totalorder %s50, %s52
      %p56 = scmp.eq.s32.totalorder %s16, 0
      %p57 = por %p55, %p56
      %p58 = scmp.ne.s32.totalorder %s50, %s52
      %p59 = scmp.eq.s32.totalorder %s21, 1
      %p60 = por %p58, %p59
      %p61 = scmp.ne.s32.totalorder %s52, %s53
      %p62 = scmp.eq.s32.totalorder %s21, 0
      %p63 = por %p61, %p62
      %p64 = scmp.ne.s32.totalorder %s52, %s53
      %p65 = scmp.eq.s32.totalorder %s22, 1
      %p66 = por %p64, %p65
      %p68 = scmp.ne.s32.totalorder %s53, %s67
      %p69 = scmp.eq.s32.totalorder %s22, 0
      %p70 = por %p68, %p69
      %s72 = sadd.s32 %s71, 1
      %p75 = scmp.eq.s32.totalorder %s16, 1
      %p76 = scmp.ne.s32.totalorder %s71, %s73
      %p77 = scmp.eq.s32.totalorder %s16, 0
      %p78 = por %p76, %p77
      %p79 = scmp.ne.s32.totalorder %s71, %s73
      %p80 = scmp.eq.s32.totalorder %s21, 1
      %p81 = por %p79, %p80
      %p82 = scmp.ne.s32.totalorder %s73, %s74
      %p83 = scmp.eq.s32.totalorder %s21, 0
      %p84 = por %p82, %p83
      %p85 = scmp.ne.s32.totalorder %s73, %s74
      %p86 = scmp.eq.s32.totalorder %s22, 1
      %p87 = por %p85, %p86
      %p89 = scmp.ne.s32.totalorder %s74, %s88
      %p90 = scmp.eq.s32.totalorder %s22, 0
      %p91 = por %p89, %p90
      %s92 = ssub.s32 %s16, %s23
      %p93 = scmp.eq.s32.totalorder %s92, 0
      %s95 = sadd.s32 %s94, 1
      %s96 = scalar_select %p93, %s94, %s95
      %p99 = pneg %p93
      %p100 = scmp.eq.s32.totalorder %s16, 1
      %p101 = por %p99, %p100
      %p102 = scmp.ne.s32.totalorder %s94, %s97
      %p103 = scmp.eq.s32.totalorder %s16, 0
      %p104 = por %p102, %p103
      %p105 = scmp.ne.s32.totalorder %s94, %s97
      %p106 = scmp.eq.s32.totalorder %s21, 1
      %p107 = por %p105, %p106
      %p108 = scmp.ne.s32.totalorder %s97, %s98
      %p109 = scmp.eq.s32.totalorder %s21, 0
      %p110 = por %p108, %p109
      %p111 = scmp.ne.s32.totalorder %s97, %s98
      %p112 = scmp.eq.s32.totalorder %s22, 1
      %p113 = por %p111, %p112
      %p115 = scmp.ne.s32.totalorder %s98, %s114
      %p116 = scmp.eq.s32.totalorder %s22, 0
      %p117 = por %p115, %p116
      %p118 = scmp.le.s32.totalorder 1, %s16
      %p119 = scmp.lt.s32.totalorder %s16, 3
      %p120 = pnand %p118, %p119
      %p121 = pneg %p120
      // Predicated region
      $region9: #{tpu_custom_call.1} parent=5 // pred_check
        _
      $region10: #{tpu_custom_call.1} parent=5 // pred_check_branch
        %123 = sbr.rel (%p120) target = $region12
      $region11: #{tpu_custom_call.1} parent=5 // pred_region
        %s124 = ssub.s32 %s16, 1
        // Predicated region
        $region13: #{tpu_custom_call.1} parent=11 // pred_check
          %p125 = pneg %p63
        $region14: #{tpu_custom_call.1} parent=11 // pred_check_branch
          %127 = sbr.rel (%p125) target = $region16
        $region15: #{tpu_custom_call.1} parent=11 // pred_region
          %s129 = ssub.s32 256, 256
          %130 = vsyncadd [#allocation6], %s129
          %s131 = sshll.u32 [#allocation5], 4
          %s132 = int_to_ptr.vmem [resolvable:$true] %s131
          %137 = dma.hbm_to_vmem [thread:$0]  %s1, 256, %s132, [#allocation6], 64, 64, 4
        $region16: #{tpu_custom_call.1} parent=11 // pred_fallthru
          _
        // Predicated region
        $region17: #{tpu_custom_call.1} parent=11 // pred_check
          %p138 = pneg %p84
        $region18: #{tpu_custom_call.1} parent=11 // pred_check_branch
          %140 = sbr.rel (%p138) target = $region20
        $region19: #{tpu_custom_call.1} parent=11 // pred_region
          _
        $region20: #{tpu_custom_call.1} parent=11 // pred_fallthru
          _
      $region12: #{tpu_custom_call.1} parent=5 // pred_fallthru
        _
      %p141 = scmp.lt.s32.totalorder %s16, 2
      // Predicated region
      $region21: #{tpu_custom_call.1} parent=5 // pred_check
        %p142 = pneg %p141
      $region22: #{tpu_custom_call.1} parent=5 // pred_check_branch
        %144 = sbr.rel (%p142) target = $region24
      $region23: #{tpu_custom_call.1} parent=5 // pred_region
        // Predicated region
        $region25: #{tpu_custom_call.1} parent=23 // pred_check
          %p145 = pneg %p36
        $region26: #{tpu_custom_call.1} parent=23 // pred_check_branch
          %147 = sbr.rel (%p145) target = $region28
        $region27: #{tpu_custom_call.1} parent=23 // pred_region
          %s148 = sand.u32 %s26, 1
          %s149 = scalar_lea.sflag [#allocation3], %s148
          %s150 = sand.u32 %s26, 1
          %s151 = smul.addr %s150, 8
          %s152 = scalar_lea.vmem [#allocation2], %s151
          %s153 = smul.u32 2, %s16
          %s155 = ssub.s32 128, 128
          %156 = vsyncadd %s149, %s155
          %s157 = smul.addr %s153, 64
          %s158 = scalar_lea.hbm %s0, %s157
          %s159 = sshll.u32 %s152, 4
          %s160 = int_to_ptr.vmem [resolvable:$true] %s159
          %165 = dma.hbm_to_vmem [thread:$0]  %s158, 128, %s160, %s149, 64, 64, 4
        $region28: #{tpu_custom_call.1} parent=23 // pred_fallthru
          _
      $region24: #{tpu_custom_call.1} parent=5 // pred_fallthru
        _
      %p166 = scmp.le.s32.totalorder 1, %s16
      %p167 = scmp.lt.s32.totalorder %s16, 3
      %p168 = pnand %p166, %p167
      %p169 = pneg %p168
      // Predicated region
      $region29: #{tpu_custom_call.1} parent=5 // pred_check
        _
      $region30: #{tpu_custom_call.1} parent=5 // pred_check_branch
        %171 = sbr.rel (%p168) target = $region32
      $region31: #{tpu_custom_call.1} parent=5 // pred_region
        %s172 = ssub.s32 %s16, 1
        %s173 = sand.u32 %s29, 1
        %s174 = scalar_lea.sflag [#allocation3], %s173
        %s175 = sand.u32 %s29, 1
        %s176 = smul.addr %s175, 8
        %s177 = scalar_lea.vmem [#allocation2], %s176
        // Predicated region
        $region33: #{tpu_custom_call.1} parent=31 // pred_check
          %p178 = pneg %p42
        $region34: #{tpu_custom_call.1} parent=31 // pred_check_branch
          %180 = sbr.rel (%p178) target = $region36
        $region35: #{tpu_custom_call.1} parent=31 // pred_region
          %181 = dma.done %s174, 128
        $region36: #{tpu_custom_call.1} parent=31 // pred_fallthru
          _
        // Predicated region
        $region37: #{tpu_custom_call.1} parent=31 // pred_check
          %p182 = pneg %p63
        $region38: #{tpu_custom_call.1} parent=31 // pred_check_branch
          %184 = sbr.rel (%p182) target = $region40
        $region39: #{tpu_custom_call.1} parent=31 // pred_region
          %185 = dma.done [#allocation6], 256
        $region40: #{tpu_custom_call.1} parent=31 // pred_fallthru
          _
        %s186 = sand.u32 %s29, 1
        %s187 = scalar_lea.sflag [#allocation3], %s186
        %s188 = sand.u32 %s29, 1
        %s189 = smul.addr %s188, 8
        %s190 = scalar_lea.vmem [#allocation2], %s189
        %p191 = pneg %p42
        %p192 = pneg %p39
        %p193 = pneg %p63
        %p194 = pneg %p60
        %p195 = pneg %p84
        %p196 = pneg %p81
        %p197 = pneg %p110
        %p198 = pneg %p107
        %s199 = sand.u32 %s97, 1
        %s200 = scalar_lea.sflag [#allocation4], %s199
        %s201 = sand.u32 %s97, 1
        %s202 = smul.addr %s201, 16
        %s203 = scalar_lea.vmem [#allocation7], %s202
        %s204 = smul.u32 2, %s21
        %s205 = smul.u32 2, %s21
        %v207 = vld [vmem:[%s177] sm:$0xf]
        %v208 = vld [vmem:[%s177 + $0x4] sm:$0xf]
        %v209 = vld [vmem:[#allocation5] sm:$0xf]
        %v210 = vld [vmem:[#allocation5 + $0x4] sm:$0xf]
        %v211 = vld [vmem:[#allocation5 + $0x8] sm:$0xf]
        %v212 = vld [vmem:[#allocation5 + $0xc] sm:$0xf]
        %v213 = vld [vmem:[%s2] sm:$0x1]
        %v215 = vlaneseq
        %v216 = vshrl.u32 %v215, 7
        %v217 = vsub.s32 0, %v216
        %v218 = vrot.slane %v213, %v217
        %v222 = vunpack.c.l.b16 %v207
        %v223 = vunpack.c.l.b16 %v208
        %v224 = vpack.c.b16 %v223, %v222
        %v229 = vunpack.c.l.b16 %v209
        %v230 = vunpack.c.l.b16 %v210
        %v231 = vunpack.c.l.b16 %v211
        %v232 = vunpack.c.l.b16 %v212
        %v233 = vpack.c.b16 %v230, %v229
        %v234 = vpack.c.b16 %v232, %v231
        %vm237 = vcmask 261120
        %v239 = vsel %vm237, %v224, 0
        %241 = vmatprep.subr.bf16.mxu0 0
        %242 = vmatpush1.bf16.msra.mxu0 %v233
        %243 = vmatprep.subr.bf16.mxu0 0
        %244 = vmatpush1.bf16.msra.mxu0 %v234
        %245 = vmatprep.subr.bf16.mxu0 0
        %246 = vmatpush1.bf16.msra.mxu0 0
        %247 = vmatprep.subr.bf16.mxu0 0
        %248 = vmatpush1.bf16.msra.mxu0 0
        %249 = vmatprep.subr.bf16.mxu0 0
        %250 = vmatpush1.bf16.msra.mxu0 0
        %251 = vmatprep.subr.bf16.mxu0 0
        %252 = vmatpush1.bf16.msra.mxu0 0
        %253 = vmatprep.subr.bf16.mxu0 0
        %254 = vmatpush1.bf16.msra.mxu0 0
        %255 = vmatprep.subr.bf16.mxu0 0
        %256 = vmatpush1.bf16.msra.mxu0 0
        %257 = vmatprep.subr.bf16.mxu0 0
        %258 = vmatpush1.bf16.msra.mxu0 0
        %259 = vmatprep.subr.bf16.mxu0 0
        %260 = vmatpush1.bf16.msra.mxu0 0
        %261 = vmatprep.subr.bf16.mxu0 0
        %262 = vmatpush1.bf16.msra.mxu0 0
        %263 = vmatprep.subr.bf16.mxu0 0
        %264 = vmatpush1.bf16.msra.mxu0 0
        %265 = vmatprep.subr.bf16.mxu0 0
        %266 = vmatpush1.bf16.msra.mxu0 0
        %267 = vmatprep.subr.bf16.mxu0 0
        %268 = vmatpush1.bf16.msra.mxu0 0
        %269 = vmatprep.subr.bf16.mxu0 0
        %270 = vmatpush1.bf16.msra.mxu0 0
        %271 = vmatprep.subr.bf16.mxu0 0
        %272 = vmatpush1.bf16.msra.mxu0 0
        %273 = vmatprep.mubr.bf16.mxu0 0
        %274 = vmatmul.mubr.bf16.gmra.mrb[0].mxu0 %v239
        %v275 = vpop.f32.mrb[0].mxu0
        %v276 = vadd.f32 %v218, %v275
        %v277 = vpop.f32.mrb[0].mxu0
        %v278 = vpop.f32.mrb[0].mxu0
        %v279 = vadd.f32 %v218, %v278
        %v280 = vpop.f32.mrb[0].mxu0
        %281 = vdwg.mxu0
        %282 = vst [vmem:[%s203] sm:$0xff] %v276
        %283 = vst [vmem:[%s203 + $0x8] sm:$0xff] %v279
        %s284 = sand.u32 %s97, 1
        %s285 = scalar_lea.sflag [#allocation4], %s284
        %s286 = sand.u32 %s97, 1
        %s287 = smul.addr %s286, 16
        %s288 = scalar_lea.vmem [#allocation7], %s287
        // Predicated region
        $region41: #{tpu_custom_call.1} parent=31 // pred_check
          %p289 = pneg %p107
        $region42: #{tpu_custom_call.1} parent=31 // pred_check_branch
          %291 = sbr.rel (%p289) target = $region44
        $region43: #{tpu_custom_call.1} parent=31 // pred_region
          %s292 = smul.u32 2, %s21
          %s294 = ssub.s32 256, 256
          %295 = vsyncadd %s285, %s294
          %s296 = smul.addr %s292, 128
          %s297 = scalar_lea.hbm %s3, %s296
          %s298 = sshll.u32 %s288, 4
          %s299 = int_to_ptr.vmem [resolvable:$true] %s298
          %304 = dma.vmem_to_hbm [thread:$0]  %s299, 256, %s297, %s285, 128, 128, 8
        $region44: #{tpu_custom_call.1} parent=31 // pred_fallthru
          _
      $region32: #{tpu_custom_call.1} parent=5 // pred_fallthru
        _
      %p305 = scmp.le.s32.totalorder 2, %s16
      // Predicated region
      $region45: #{tpu_custom_call.1} parent=5 // pred_check
        %p306 = pneg %p305
      $region46: #{tpu_custom_call.1} parent=5 // pred_check_branch
        %308 = sbr.rel (%p306) target = $region48
      $region47: #{tpu_custom_call.1} parent=5 // pred_region
        %s309 = ssub.s32 %s16, 2
        // Predicated region
        $region49: #{tpu_custom_call.1} parent=47 // pred_check
          %p310 = pneg %p113
        $region50: #{tpu_custom_call.1} parent=47 // pred_check_branch
          %312 = sbr.rel (%p310) target = $region52
        $region51: #{tpu_custom_call.1} parent=47 // pred_region
          %s313 = sand.u32 %s98, 1
          %s314 = scalar_lea.sflag [#allocation4], %s313
          %s315 = sand.u32 %s98, 1
          %s316 = smul.addr %s315, 16
          %s317 = scalar_lea.vmem [#allocation7], %s316
          %318 = dma.done %s314, 256
        $region52: #{tpu_custom_call.1} parent=47 // pred_fallthru
          _
      $region48: #{tpu_custom_call.1} parent=5 // pred_fallthru
        _
    $region6: #{tpu_custom_call.1} parent=1 // loop_footer
      %s20 = sadd.s32 1, %s16
    $region7: #{tpu_custom_call.1} parent=1 // loop_footer_branch
      %15 = sbr.rel target = $region3
    $region8: #{tpu_custom_call.1} parent=1 // loop_exit
      _
    %319 = vsyncpa [#allocation3], 1
    %s320 = scalar_lea.sflag [#allocation3], 1
    %321 = vsyncpa %s320, 1
    %322 = vsyncpa [#allocation6], 1
    %323 = vsyncpa [#allocation4], 1
    %s324 = scalar_lea.sflag [#allocation4], 1
    %325 = vsyncpa %s324, 1

</llo_original>
